<compile_context>
chip_gen: v5e
topology: v5e:2x2
jax: 0.10.0
libtpu: 0.0.40
codegen_flags: <defaults>
</compile_context>

<pallas_src>
import functools
import math

import jax
import jax.numpy as jnp
from jax.experimental import pallas as pl
from jax.experimental.pallas import tpu as pltpu


# --------------------------------------------------------------------------- #
# Kernels
# --------------------------------------------------------------------------- #
def _pe_add_aligned_kernel(x_ref, pe_ref, o_ref, *, batch: int, d_model: int):
    """Path A: D % 128 == 0. Lane-aligned per-batch slice adds, no temp."""
    pe = pe_ref[...]                                   # (TS, D)
    for b in range(batch):                             # static unroll
        sl = slice(b * d_model, (b + 1) * d_model)
        o_ref[:, sl] = x_ref[:, sl] + pe


def _pe_add_tile_kernel(x_ref, pe_ref, o_ref, *, batch: int):
    """Path B: B*D lane-aligned but D ragged. jnp.tile temp (budget-accounted)."""
    pe = pe_ref[...]                                   # (TS, D)
    if batch > 1:
        pe = jnp.tile(pe, (1, batch))                  # (TS, B*D) temp
    o_ref[...] = x_ref[...] + pe


def _pe_add_flat_kernel(x_ref, pe_ref, o_ref):
    """Path C: pe pre-broadcast in the wrapper; plain elementwise add."""
    o_ref[...] = x_ref[...] + pe_ref[...]


# --------------------------------------------------------------------------- #
# pe buffer construction (mirrors the torch code exactly)
# --------------------------------------------------------------------------- #
def make_positional_encoding(d_model: int, max_len: int = 5000,
                             dtype=jnp.float32) -> jnp.ndarray:
    position = jnp.arange(max_len, dtype=jnp.float32)[:, None]           # (max_len, 1)
    div_term = jnp.exp(
        jnp.arange(d_model, dtype=jnp.float32) * (-math.log(10000.0) / d_model)
    )                                                                    # (d_model,)
    pe = jnp.sin(position * div_term) + jnp.cos(position * div_term)     # (max_len, d_model)
    # unsqueeze(0).transpose(0, 1) -> (max_len, 1, d_model)
    return pe[:, None, :].astype(dtype)


# --------------------------------------------------------------------------- #
# Generation-aware tiling helpers
# --------------------------------------------------------------------------- #
def _tpu_generation() -> str:
    try:
        kind = jax.devices()[0].device_kind.lower()
    except Exception:
        kind = ""
    for g in ("v7", "v6", "v5"):
        if g in kind:
            return g
    return ""


def _vmem_budget_and_limit():
    """(tile budget bytes, explicit vmem_limit_bytes) per TPU generation."""
    gen = _tpu_generation()
    if gen == "v7":     # 64 MiB physical per TC, 32 MiB scoped default
        return 36 * 1024 * 1024, 44 * 1024 * 1024
    if gen == "v6":     # 128 MiB physical, raise the 32 MiB scoped default
        return 40 * 1024 * 1024, 64 * 1024 * 1024
    if gen == "v5":     # slow HBM already amortizes overhead; keep tiles small
        return 12 * 1024 * 1024, 64 * 1024 * 1024
    return 12 * 1024 * 1024, 32 * 1024 * 1024           # unknown: conservative


def _min_grid_steps() -> int:
    # v7x has 2 TensorCores per chip; keep enough steps so both get work.
    return 8 if _tpu_generation() == "v7" else 1


def _pick_tile_rows(total_rows: int, row_bytes: int, sublane: int,
                    budget: int, min_steps: int) -> int:
    """Largest sublane-multiple row tile whose double-buffered footprint fits."""
    ts = max(sublane, budget // (2 * max(1, row_bytes)))
    if min_steps > 1:
        cap = -(-total_rows // min_steps)                # ceil
        cap = max(sublane, -(-cap // sublane) * sublane) # round up to sublane
        ts = min(ts, cap)
    if ts >= total_rows:
        return total_rows                                # full extent is legal
    return max(sublane, (ts // sublane) * sublane)


# --------------------------------------------------------------------------- #
# Forward wrapper
# --------------------------------------------------------------------------- #
def positional_encoding_forward(x: jnp.ndarray, pe: jnp.ndarray,
                                pos: int = 0) -> jnp.ndarray:
    """x: (S, B, D); pe: (max_len, 1, D). Returns x + pe[pos:pos+S] (eval dropout)."""
    S, B, D = x.shape
    max_len = pe.shape[0]
    if pos < 0 or pos + S > max_len:
        raise ValueError(
            f"pos={pos} with seq_len={S} out of range for max_len={max_len}")

    pe_rows = pe[pos:pos + S, 0, :].astype(x.dtype)      # static slice -> (S, D)

    itemsize = jnp.dtype(x.dtype).itemsize
    sublane = 8 if itemsize >= 4 else (16 if itemsize == 2 else 32)
    budget, vmem_limit = _vmem_budget_and_limit()
    min_steps = _min_grid_steps()
    cparams = pltpu.CompilerParams(
        dimension_semantics=("parallel",),               # shard rows across TCs (v7x)
        vmem_limit_bytes=vmem_limit,
    )

    aligned_d = (D % 128 == 0) and (B <= 64)             # cap static unroll size
    aligned_bd = ((B * D) % 128 == 0)

    if aligned_d or aligned_bd:
        # ---- Paths A / B: x stays as lane-dense (S, B*D); pe tile is (S, D). ----
        x2 = x.reshape(S, B * D)
        if aligned_d:
            kernel = functools.partial(_pe_add_aligned_kernel, batch=B, d_model=D)
            row_bytes = (2 * B * D + D) * itemsize                     # x + out + pe
        else:
            kernel = functools.partial(_pe_add_tile_kernel, batch=B)
            row_bytes = (3 * B * D + D) * itemsize                     # + tile temp

        ts = _pick_tile_rows(S, row_bytes, sublane, budget, min_steps)
        grid = (pl.cdiv(S, ts),)
        out2 = pl.pallas_call(
            kernel,
            out_shape=jax.ShapeDtypeStruct((S, B * D), x.dtype),
            grid=grid,
            in_specs=[
                pl.BlockSpec((ts, B * D), lambda i: (i, 0)),           # x tile
                pl.BlockSpec((ts, D), lambda i: (i, 0)),               # pe tile
            ],
            out_specs=pl.BlockSpec((ts, B * D), lambda i: (i, 0)),
            compiler_params=cparams,
        )(x2, pe_rows)
        return out2.reshape(S, B, D)

    # ---- Path C: small / ragged B*D. Pre-broadcast pe and flatten lane-dense. ----
    pe_full = jnp.broadcast_to(pe_rows[:, None, :], (S, B, D))
    total = S * B * D
    cols = B * D
    for c in (1024, 512, 256, 128):                       # densest lane-aligned view
        if total % c == 0:
            cols = c
            break
    rows = total // cols
    x2 = x.reshape(rows, cols)
    pe2 = pe_full.reshape(rows, cols)

    row_bytes = 3 * cols * itemsize                        # x + pe + out rows
    ts = _pick_tile_rows(rows, row_bytes, sublane, budget, min_steps)
    grid = (pl.cdiv(rows, ts),)
    out2 = pl.pallas_call(
        _pe_add_flat_kernel,
        out_shape=jax.ShapeDtypeStruct((rows, cols), x.dtype),
        grid=grid,
        in_specs=[
            pl.BlockSpec((ts, cols), lambda i: (i, 0)),
            pl.BlockSpec((ts, cols), lambda i: (i, 0)),
        ],
        out_specs=pl.BlockSpec((ts, cols), lambda i: (i, 0)),
        compiler_params=cparams,
    )(x2, pe2)
    return out2.reshape(S, B, D)


# --------------------------------------------------------------------------- #
# Self-test
# --------------------------------------------------------------------------- #
if __name__ == "__main__":
    key = jax.random.PRNGKey(0)

    # --- Path C: small ragged B*D (TranAD-like tiny d_model) -----------------
    S, B, D = 16, 2, 32
    MAX_LEN, POS = 128, 3
    k0, k1, k2 = jax.random.split(key, 3)
    x = jax.random.normal(k0, (S, B, D), dtype=jnp.float32)
    pe = make_positional_encoding(D, max_len=MAX_LEN, dtype=jnp.float32)
    out = jax.block_until_ready(positional_encoding_forward(x, pe, pos=POS))
    ref = x + pe[POS:POS + S, :, :]
    assert out.shape == (S, B, D)
    assert jnp.allclose(out, ref, atol=1e-6), "mismatch vs reference (path C)"
    out0 = jax.block_until_ready(positional_encoding_forward(x, pe, pos=0))
    assert jnp.allclose(out0, x + pe[0:S, :, :], atol=1e-6), "mismatch (pos=0)"

    # --- Path A: D is a lane multiple (in-kernel lane-aligned broadcast) -----
    S2, B2, D2 = 16, 2, 128
    xa = jax.random.normal(k1, (S2, B2, D2), dtype=jnp.float32)
    pea = make_positional_encoding(D2, max_len=64, dtype=jnp.float32)
    outa = jax.block_until_ready(positional_encoding_forward(xa, pea, pos=5))
    refa = xa + pea[5:5 + S2, :, :]
    assert jnp.allclose(outa, refa, atol=1e-6), "mismatch vs reference (path A)"

    # --- Path B: B*D lane-aligned but D ragged (accounted jnp.tile) ----------
    S3, B3, D3 = 16, 8, 48
    xb = jax.random.normal(k2, (S3, B3, D3), dtype=jnp.float32)
    peb = make_positional_encoding(D3, max_len=32, dtype=jnp.float32)
    outb = jax.block_until_ready(positional_encoding_forward(xb, peb, pos=2))
    refb = xb + peb[2:2 + S3, :, :]
    assert jnp.allclose(outb, refb, atol=1e-6), "mismatch vs reference (path B)"

    print("KERNEL_OK")
</pallas_src>

<mosaic_0001>
module attributes {stable_mosaic.version = 11 : i64} {
  func.func @_pe_add_flat_kernel(%arg0: i32, %arg1: memref<1x1024xf32, #tpu.memory_space<vmem>>, %arg2: memref<1x1024xf32, #tpu.memory_space<vmem>>, %arg3: memref<1x1024xf32, #tpu.memory_space<vmem>>) attributes {dimension_semantics = [#tpu.dimension_semantics<parallel>], iteration_bounds = array<i64: 1>, scalar_prefetch = 0 : i64, scratch_operands = 0 : i64, tpu.core_type = #tpu.core_type<tc>, window_params = [{transform_indices = @transform_0, window_bounds = array<i64: 1, 1024>}, {transform_indices = @transform_1, window_bounds = array<i64: 1, 1024>}, {transform_indices = @transform_2, window_bounds = array<i64: 1, 1024>}]} {
    %c0 = arith.constant 0 : index
    %c0_0 = arith.constant 0 : index
    %0 = vector.load %arg1[%c0, %c0_0] : memref<1x1024xf32, #tpu.memory_space<vmem>>, vector<1x1024xf32>
    %c0_1 = arith.constant 0 : index
    %c0_2 = arith.constant 0 : index
    %1 = vector.load %arg2[%c0_1, %c0_2] : memref<1x1024xf32, #tpu.memory_space<vmem>>, vector<1x1024xf32>
    %2 = arith.addf %0, %1 : vector<1x1024xf32>
    %c0_3 = arith.constant 0 : index
    %c0_4 = arith.constant 0 : index
    %3 = vector.load %arg3[%c0_3, %c0_4] : memref<1x1024xf32, #tpu.memory_space<vmem>>, vector<1x1024xf32>
    tpu.vector_store %arg3[%c0_3, %c0_4], %2 {strides = array<i32>} : memref<1x1024xf32, #tpu.memory_space<vmem>>, vector<1x1024xf32>,
    return
  }
  func.func @transform_0(%arg0: i32) -> (i32, i32) {
    %c0_i32 = arith.constant 0 : i32
    %c0_i32_0 = arith.constant 0 : i32
    return %arg0, %c0_i32 : i32, i32
  }
  func.func @transform_1(%arg0: i32) -> (i32, i32) {
    %c0_i32 = arith.constant 0 : i32
    %c0_i32_0 = arith.constant 0 : i32
    return %arg0, %c0_i32 : i32, i32
  }
  func.func @transform_2(%arg0: i32) -> (i32, i32) {
    %c0_i32 = arith.constant 0 : i32
    %c0_i32_0 = arith.constant 0 : i32
    return %arg0, %c0_i32 : i32, i32
  }
}

</mosaic_0001>

<llo_original>
// kernel: tpu_custom_call.1
$region0: #{tpu_custom_call.1}
  #allocation0 [shape = 'u32[]', space=smem, size = 0x4, offset = 0x4, fixed_abs, tag = 'smem constant byte address 0x4 - core index']
  #allocation1 [shape = 'u32[72,128]{1,0:T(1,128)}', space=vmem, size = 0x9000, scoped, tag = 'internal scratch']
  %s0 = inlined_call_operand.hbm [shape: f32[1,1024], index: 0, kind: input, shape index: {}]
  %s1 = inlined_call_operand.hbm [shape: f32[1,1024], index: 1, kind: input, shape index: {}]
  %s2 = inlined_call_operand.hbm [shape: f32[1,1024], index: 2, kind: output, shape index: {}]
  %s3 = sld [smem:[#allocation0]]
  $region26: #{tpu_custom_call.1} parent=0
    _
  %s5 = ssub.s32 1, %s3
  %s6 = scalar_select 0, %s5, %s3
  $region1: #{tpu_custom_call.1} parent=0
    #allocation2 [shape = 'u8[4096]{0}', space=vmem, size = 0x1000, scoped, tag = 'input window, operand 0, single buffered']
    #allocation3 [shape = 's32[1]{0}', space=sflag, size = 0x4, scoped, tag = 'scoped memory for tpu_custom_call.1']
    #allocation4 [shape = 's32[1]{0}', space=sflag, size = 0x4, scoped, tag = 'scoped memory for tpu_custom_call.1']
    #allocation5 [shape = 'u8[4096]{0}', space=vmem, size = 0x1000, scoped, tag = 'input window, operand 1, single buffered']
    #allocation6 [shape = 's32[1]{0}', space=sflag, size = 0x4, scoped, tag = 'scoped memory for tpu_custom_call.1']
    #allocation7 [shape = 'u8[4096]{0}', space=vmem, size = 0x1000, scoped, tag = 'output window, operand 0, single buffered']
    %7 = vsyncpa [#allocation3], 0
    %8 = vsyncpa [#allocation6], 0
    %9 = vsyncpa [#allocation4], 0
    // Predicated region
    $region2: #{tpu_custom_call.1} parent=1 // pred_check
      _
    $region3: #{tpu_custom_call.1} parent=1 // pred_check_branch
      %11 = sbr.rel (0) target = $region5
    $region4: #{tpu_custom_call.1} parent=1 // pred_region
      %13 = vsyncadd [#allocation3], 0
      %s15 = sshll.u32 %s0, 4
      %s16 = int_to_ptr.hbm [resolvable:$true] %s15
      %s17 = sshll.u32 [#allocation2], 4
      %s18 = int_to_ptr.vmem [resolvable:$true] %s17
      %20 = dma.hbm_to_vmem [thread:$0]  %s16, 128, %s18, [#allocation3]
    $region5: #{tpu_custom_call.1} parent=1 // pred_fallthru
      _
    // Predicated region
    $region6: #{tpu_custom_call.1} parent=1 // pred_check
      _
    $region7: #{tpu_custom_call.1} parent=1 // pred_check_branch
      %22 = sbr.rel (0) target = $region9
    $region8: #{tpu_custom_call.1} parent=1 // pred_region
      %24 = vsyncadd [#allocation6], 0
      %s26 = sshll.u32 %s1, 4
      %s27 = int_to_ptr.hbm [resolvable:$true] %s26
      %s28 = sshll.u32 [#allocation5], 4
      %s29 = int_to_ptr.vmem [resolvable:$true] %s28
      %31 = dma.hbm_to_vmem [thread:$0]  %s27, 128, %s29, [#allocation6]
    $region9: #{tpu_custom_call.1} parent=1 // pred_fallthru
      _
    // Predicated region
    $region10: #{tpu_custom_call.1} parent=1 // pred_check
      _
    $region11: #{tpu_custom_call.1} parent=1 // pred_check_branch
      %33 = sbr.rel (0) target = $region13
    $region12: #{tpu_custom_call.1} parent=1 // pred_region
      %35 = dma.done [#allocation3], 128
    $region13: #{tpu_custom_call.1} parent=1 // pred_fallthru
      _
    // Predicated region
    $region14: #{tpu_custom_call.1} parent=1 // pred_check
      _
    $region15: #{tpu_custom_call.1} parent=1 // pred_check_branch
      %37 = sbr.rel (0) target = $region17
    $region16: #{tpu_custom_call.1} parent=1 // pred_region
      %39 = dma.done [#allocation6], 128
    $region17: #{tpu_custom_call.1} parent=1 // pred_fallthru
      _
    %v40 = vld [vmem:[#allocation2] sm:$0xff]
    %v41 = vld [vmem:[#allocation5] sm:$0xff]
    %v42 = vadd.f32 %v40, %v41
    %43 = vst [vmem:[#allocation7] sm:$0xff] %v42
    // Predicated region
    $region18: #{tpu_custom_call.1} parent=1 // pred_check
      _
    $region19: #{tpu_custom_call.1} parent=1 // pred_check_branch
      %45 = sbr.rel (0) target = $region21
    $region20: #{tpu_custom_call.1} parent=1 // pred_region
      %47 = vsyncadd [#allocation4], 0
      %s49 = sshll.u32 [#allocation7], 4
      %s50 = int_to_ptr.vmem [resolvable:$true] %s49
      %s51 = sshll.u32 %s2, 4
      %s52 = int_to_ptr.hbm [resolvable:$true] %s51
      %54 = dma.vmem_to_hbm [thread:$0]  %s50, 128, %s52, [#allocation4]
    $region21: #{tpu_custom_call.1} parent=1 // pred_fallthru
      _
    // Predicated region
    $region22: #{tpu_custom_call.1} parent=1 // pred_check
      _
    $region23: #{tpu_custom_call.1} parent=1 // pred_check_branch
      %56 = sbr.rel (0) target = $region25
    $region24: #{tpu_custom_call.1} parent=1 // pred_region
      %58 = dma.done [#allocation4], 128
    $region25: #{tpu_custom_call.1} parent=1 // pred_fallthru
      _
    %59 = vsyncpa [#allocation3], 1
    %60 = vsyncpa [#allocation6], 1
    %61 = vsyncpa [#allocation4], 1

</llo_original>
